<compile_context>
chip_gen: v6e
topology: v6e:2x2x1
jax: 0.10.0
libtpu: 0.0.40
codegen_flags: <defaults>
</compile_context>

<pallas_src>
import math
from functools import partial

import jax
import jax.numpy as jnp
from jax.experimental import pallas as pl
from jax.experimental.pallas import tpu as pltpu


def _round_up(x, m):
    return ((x + m - 1) // m) * m


def _round_down(x, m):
    return (x // m) * m


def _layer_dims(n_input, n_output):
    enc = [(10, n_input), (9, 10), (9, 9), (10, 9)]      # (out, in)
    dec = [(9, 10), (9, 9), (10, 9), (n_output, 10)]
    return enc, dec


def _pack_params(params, layer_dims):
    """Pack all weights/biases into one zero-padded slab.

    Each layer occupies a (PO, PC) block: [:out, :in] = W ([out, in]),
    column `in` holds the bias.  Zero padding keeps unused rows/cols inert.
    """
    ws = params["enc_w"] + params["dec_w"]
    bs = params["enc_b"] + params["dec_b"]
    po = _round_up(max(o for o, _ in layer_dims), 8)      # sublane-aligned blocks
    pc = max(i for _, i in layer_dims) + 1                # widest fan-in + bias col
    blocks = []
    for (w, b), (o, i) in zip(zip(ws, bs), layer_dims):
        blk = jnp.zeros((po, pc), jnp.float32)
        blk = blk.at[:o, :i].set(w)
        blk = blk.at[:o, i].set(b)
        blocks.append(blk)
    return jnp.concatenate(blocks, axis=0), po, pc


def _choose_tile(total, tile_b, bytes_per_row):
    """Pick a lane-aligned batch tile (columns of the feature-major layout)."""
    # Conservative VMEM budget for the double-buffered in/out tiles — works on
    # v5e/v6e (128 MiB) and v7x (64 MiB physical / 32 MiB scoped default).
    vmem_budget = 24 << 20
    max_by_vmem = max(128, _round_down(vmem_budget // (2 * bytes_per_row), 128))
    if total <= 256:
        return total                       # single block == full batch dim (legal)
    tile_b = max(128, _round_down(tile_b, 128))
    # >= 2 grid steps so v7x's two TensorCores both get work.
    half = max(128, _round_down(pl.cdiv(total, 2), 128))
    return min(tile_b, half, max_by_vmem)


def _make_kernel(layer_dims, n_enc, po, use_bf16):
    n_layers = len(layer_dims)

    def kernel(x_ref, slab_ref, ed_ref, de_ref):
        slab = slab_ref[...]          # whole param slab, hoisted once per step
        h = x_ref[...]                # (n_input, TILE_B), batch on lanes, f32

        def layer(h, idx, activate):
            out_d, in_d = layer_dims[idx]
            blk = slab[idx * po:(idx + 1) * po]       # sublane-aligned block
            w = blk[:out_d, :in_d]                    # [out, in]
            b = blk[:out_d, in_d:in_d + 1]            # [out, 1] -> lane-broadcast
            if use_bf16:
                y = jnp.dot(w.astype(jnp.bfloat16), h.astype(jnp.bfloat16),
                            preferred_element_type=jnp.float32)
            else:
                y = jnp.dot(w, h, preferred_element_type=jnp.float32)
            y = y + b
            return jnp.tanh(y) if activate else y

        # encode1: 4x (Linear -> Dropout(identity at inference) -> Tanh)
        for i in range(n_enc):
            h = layer(h, i, activate=True)
        ed_ref[...] = h.astype(ed_ref.dtype)          # lane-dense (10, TILE_B) store

        # decode1: 3x (Linear -> Tanh) + final Linear (no activation)
        for i in range(n_enc, n_layers):
            h = layer(h, i, activate=(i < n_layers - 1))
        de_ref[...] = h.astype(de_ref.dtype)          # lane-dense (n_out, TILE_B)

    return kernel


@partial(jax.jit, static_argnames=("tile_b", "use_bf16_matmul"))
def graph2vec_forward(x, matrix, params, tile_b=8192, use_bf16_matmul=False):
    """params: dict with enc/dec weight lists ([out, in]) and bias lists ([out])."""
    B1, n_input = x.shape
    B2, _ = matrix.shape
    total = B1 + B2
    n_output = params["dec_w"][-1].shape[0]

    enc_dims, dec_dims = _layer_dims(n_input, n_output)
    layer_dims = enc_dims + dec_dims

    # Single wrapper-side layout op: stack the two batches AND move to the
    # feature-major (batch-on-lanes) layout the kernel expects.  Under jit XLA
    # fuses this into one HBM pass feeding the kernel.
    stacked_t = jnp.concatenate([x, matrix], axis=0).T          # (n_input, total)

    slab, po, _ = _pack_params(params, layer_dims)

    bytes_per_row = 4 * (n_input + 10 + n_output)
    tile = _choose_tile(total, tile_b, bytes_per_row)
    grid = (pl.cdiv(total, tile),)

    # VMEM limit: double-buffered per-step tiles + headroom for in-kernel
    # temporaries; capped well below v7x's 64 MiB physical VMEM.
    vmem_limit = int(min(2 * tile * bytes_per_row + (16 << 20), 48 << 20))

    kernel = _make_kernel(tuple(layer_dims), len(enc_dims), po, use_bf16_matmul)

    ed_t, de_t = pl.pallas_call(
        kernel,
        grid=grid,
        in_specs=[
            # Batch tile on the lane axis.
            pl.BlockSpec((n_input, tile), lambda i: (0, i)),
            # Parameter slab: full-shape block, constant index_map -> fetched
            # once and kept VMEM-resident across the whole grid.
            pl.BlockSpec(slab.shape, lambda i: (0, 0)),
        ],
        out_specs=(
            pl.BlockSpec((10, tile), lambda i: (0, i)),
            pl.BlockSpec((n_output, tile), lambda i: (0, i)),
        ),
        out_shape=(
            jax.ShapeDtypeStruct((10, total), jnp.float32),
            jax.ShapeDtypeStruct((n_output, total), jnp.float32),
        ),
        compiler_params=pltpu.CompilerParams(
            dimension_semantics=("parallel",),
            vmem_limit_bytes=vmem_limit,
        ),
    )(stacked_t, slab)

    # Layout plumbing back to the PyTorch (batch, features) convention.
    ed1, ed2 = ed_t[:, :B1].T, ed_t[:, B1:].T
    de1, de2 = de_t[:, :B1].T, de_t[:, B1:].T
    return ed1, ed2, de1, de2


def init_params(key, n_input, n_output):
    """PyTorch-style Linear init: U(-1/sqrt(fan_in), 1/sqrt(fan_in)).
    Weights stored as [out, in] (PyTorch-native); biases as [out]."""
    enc_dims, dec_dims = _layer_dims(n_input, n_output)

    def make(dims, key):
        ws, bs = [], []
        for (fo, fi) in dims:
            key, kw, kb = jax.random.split(key, 3)
            bound = 1.0 / math.sqrt(fi)
            ws.append(jax.random.uniform(kw, (fo, fi), jnp.float32, -bound, bound))
            bs.append(jax.random.uniform(kb, (fo,), jnp.float32, -bound, bound))
        return ws, bs, key

    enc_w, enc_b, key = make(enc_dims, key)
    dec_w, dec_b, key = make(dec_dims, key)
    return {"enc_w": enc_w, "enc_b": enc_b, "dec_w": dec_w, "dec_b": dec_b}


def reference_forward(x, matrix, params):
    def mlp(h, ws, bs, last_act):
        n = len(ws)
        for i, (w, b) in enumerate(zip(ws, bs)):
            h = h @ w.T + b
            if i < n - 1 or last_act:
                h = jnp.tanh(h)
        return h

    ed1 = mlp(x, params["enc_w"], params["enc_b"], last_act=True)
    ed2 = mlp(matrix, params["enc_w"], params["enc_b"], last_act=True)
    de1 = mlp(ed1, params["dec_w"], params["dec_b"], last_act=False)
    de2 = mlp(ed2, params["dec_w"], params["dec_b"], last_act=False)
    return ed1, ed2, de1, de2


if __name__ == "__main__":
    n_input, n_output = 16, 16
    B = 8

    key = jax.random.PRNGKey(0)
    key, kx, km = jax.random.split(key, 3)
    x = jax.random.normal(kx, (B, n_input), jnp.float32)
    matrix = jax.random.normal(km, (B, n_input), jnp.float32)

    params = init_params(key, n_input, n_output)

    # Small case: single grid step (block == full batch dim).
    outs = jax.block_until_ready(graph2vec_forward(x, matrix, params))
    refs = reference_forward(x, matrix, params)
    for o, r in zip(outs, refs):
        assert o.shape == r.shape and o.dtype == r.dtype
        assert jnp.allclose(o, r, atol=1e-5, rtol=1e-5), "mismatch vs reference"

    # Larger case: multi-step grid, partial edge block, v7x two-core split path.
    key, kx2, km2 = jax.random.split(key, 3)
    x2 = jax.random.normal(kx2, (200, n_input), jnp.float32)
    m2 = jax.random.normal(km2, (137, n_input), jnp.float32)
    outs2 = jax.block_until_ready(graph2vec_forward(x2, m2, params))
    refs2 = reference_forward(x2, m2, params)
    for o, r in zip(outs2, refs2):
        assert o.shape == r.shape and o.dtype == r.dtype
        assert jnp.allclose(o, r, atol=1e-5, rtol=1e-5), "mismatch vs reference (tiled)"

    print("KERNEL_OK")
</pallas_src>

<mosaic_0001>
module attributes {stable_mosaic.version = 11 : i64} {
  func.func @kernel(%arg0: i32, %arg1: memref<16x16xf32, #tpu.memory_space<vmem>>, %arg2: memref<128x17xf32, #tpu.memory_space<vmem>>, %arg3: memref<10x16xf32, #tpu.memory_space<vmem>>, %arg4: memref<16x16xf32, #tpu.memory_space<vmem>>) attributes {dimension_semantics = [#tpu.dimension_semantics<parallel>], iteration_bounds = array<i64: 1>, scalar_prefetch = 0 : i64, scratch_operands = 0 : i64, tpu.core_type = #tpu.core_type<tc>, window_params = [{transform_indices = @transform_0, window_bounds = array<i64: 16, 16>}, {pipeline_mode = #tpu.pipeline_mode<synchronous>, transform_indices = @transform_1, window_bounds = array<i64: 128, 17>}, {transform_indices = @transform_2, window_bounds = array<i64: 10, 16>}, {transform_indices = @transform_3, window_bounds = array<i64: 16, 16>}]} {
    %c0 = arith.constant 0 : index
    %c0_0 = arith.constant 0 : index
    %0 = vector.load %arg2[%c0, %c0_0] : memref<128x17xf32, #tpu.memory_space<vmem>>, vector<128x17xf32>
    %c0_1 = arith.constant 0 : index
    %c0_2 = arith.constant 0 : index
    %1 = vector.load %arg1[%c0_1, %c0_2] : memref<16x16xf32, #tpu.memory_space<vmem>>, vector<16x16xf32>
    %2 = vector.extract_strided_slice %0 {offsets = [0, 0], sizes = [16, 17], strides = [1, 1]} : vector<128x17xf32> to vector<16x17xf32>
    %3 = vector.extract_strided_slice %2 {offsets = [0, 0], sizes = [10, 16], strides = [1, 1]} : vector<16x17xf32> to vector<10x16xf32>
    %4 = vector.extract_strided_slice %2 {offsets = [0, 16], sizes = [10, 1], strides = [1, 1]} : vector<16x17xf32> to vector<10x1xf32>
    %cst = arith.constant dense<0.000000e+00> : vector<10x16xf32>
    %5 = tpu.matmul %3, %1, %cst {dimension_numbers = #tpu.dot_dimension_numbers<[1], [0], [0], [1], [0, 0, 1, 1], [], []>} : vector<10x16xf32>, vector<16x16xf32>, vector<10x16xf32> -> vector<10x16xf32>
    %6 = vector.broadcast %4 : vector<10x1xf32> to vector<10x16xf32>
    %7 = arith.addf %5, %6 : vector<10x16xf32>
    %8 = math.tanh %7 : vector<10x16xf32>
    %9 = vector.extract_strided_slice %0 {offsets = [16, 0], sizes = [16, 17], strides = [1, 1]} : vector<128x17xf32> to vector<16x17xf32>
    %10 = vector.extract_strided_slice %9 {offsets = [0, 0], sizes = [9, 10], strides = [1, 1]} : vector<16x17xf32> to vector<9x10xf32>
    %11 = vector.extract_strided_slice %9 {offsets = [0, 10], sizes = [9, 1], strides = [1, 1]} : vector<16x17xf32> to vector<9x1xf32>
    %cst_3 = arith.constant dense<0.000000e+00> : vector<9x16xf32>
    %12 = tpu.matmul %10, %8, %cst_3 {dimension_numbers = #tpu.dot_dimension_numbers<[1], [0], [0], [1], [0, 0, 1, 1], [], []>} : vector<9x10xf32>, vector<10x16xf32>, vector<9x16xf32> -> vector<9x16xf32>
    %13 = vector.broadcast %11 : vector<9x1xf32> to vector<9x16xf32>
    %14 = arith.addf %12, %13 : vector<9x16xf32>
    %15 = math.tanh %14 : vector<9x16xf32>
    %16 = vector.extract_strided_slice %0 {offsets = [32, 0], sizes = [16, 17], strides = [1, 1]} : vector<128x17xf32> to vector<16x17xf32>
    %17 = vector.extract_strided_slice %16 {offsets = [0, 0], sizes = [9, 9], strides = [1, 1]} : vector<16x17xf32> to vector<9x9xf32>
    %18 = vector.extract_strided_slice %16 {offsets = [0, 9], sizes = [9, 1], strides = [1, 1]} : vector<16x17xf32> to vector<9x1xf32>
    %cst_4 = arith.constant dense<0.000000e+00> : vector<9x16xf32>
    %19 = tpu.matmul %17, %15, %cst_4 {dimension_numbers = #tpu.dot_dimension_numbers<[1], [0], [0], [1], [0, 0, 1, 1], [], []>} : vector<9x9xf32>, vector<9x16xf32>, vector<9x16xf32> -> vector<9x16xf32>
    %20 = vector.broadcast %18 : vector<9x1xf32> to vector<9x16xf32>
    %21 = arith.addf %19, %20 : vector<9x16xf32>
    %22 = math.tanh %21 : vector<9x16xf32>
    %23 = vector.extract_strided_slice %0 {offsets = [48, 0], sizes = [16, 17], strides = [1, 1]} : vector<128x17xf32> to vector<16x17xf32>
    %24 = vector.extract_strided_slice %23 {offsets = [0, 0], sizes = [10, 9], strides = [1, 1]} : vector<16x17xf32> to vector<10x9xf32>
    %25 = vector.extract_strided_slice %23 {offsets = [0, 9], sizes = [10, 1], strides = [1, 1]} : vector<16x17xf32> to vector<10x1xf32>
    %cst_5 = arith.constant dense<0.000000e+00> : vector<10x16xf32>
    %26 = tpu.matmul %24, %22, %cst_5 {dimension_numbers = #tpu.dot_dimension_numbers<[1], [0], [0], [1], [0, 0, 1, 1], [], []>} : vector<10x9xf32>, vector<9x16xf32>, vector<10x16xf32> -> vector<10x16xf32>
    %27 = vector.broadcast %25 : vector<10x1xf32> to vector<10x16xf32>
    %28 = arith.addf %26, %27 : vector<10x16xf32>
    %29 = math.tanh %28 : vector<10x16xf32>
    %c0_6 = arith.constant 0 : index
    %c0_7 = arith.constant 0 : index
    %30 = vector.load %arg3[%c0_6, %c0_7] : memref<10x16xf32, #tpu.memory_space<vmem>>, vector<10x16xf32>
    tpu.vector_store %arg3[%c0_6, %c0_7], %29 {strides = array<i32>} : memref<10x16xf32, #tpu.memory_space<vmem>>, vector<10x16xf32>,
    %31 = vector.extract_strided_slice %0 {offsets = [64, 0], sizes = [16, 17], strides = [1, 1]} : vector<128x17xf32> to vector<16x17xf32>
    %32 = vector.extract_strided_slice %31 {offsets = [0, 0], sizes = [9, 10], strides = [1, 1]} : vector<16x17xf32> to vector<9x10xf32>
    %33 = vector.extract_strided_slice %31 {offsets = [0, 10], sizes = [9, 1], strides = [1, 1]} : vector<16x17xf32> to vector<9x1xf32>
    %cst_8 = arith.constant dense<0.000000e+00> : vector<9x16xf32>
    %34 = tpu.matmul %32, %29, %cst_8 {dimension_numbers = #tpu.dot_dimension_numbers<[1], [0], [0], [1], [0, 0, 1, 1], [], []>} : vector<9x10xf32>, vector<10x16xf32>, vector<9x16xf32> -> vector<9x16xf32>
    %35 = vector.broadcast %33 : vector<9x1xf32> to vector<9x16xf32>
    %36 = arith.addf %34, %35 : vector<9x16xf32>
    %37 = math.tanh %36 : vector<9x16xf32>
    %38 = vector.extract_strided_slice %0 {offsets = [80, 0], sizes = [16, 17], strides = [1, 1]} : vector<128x17xf32> to vector<16x17xf32>
    %39 = vector.extract_strided_slice %38 {offsets = [0, 0], sizes = [9, 9], strides = [1, 1]} : vector<16x17xf32> to vector<9x9xf32>
    %40 = vector.extract_strided_slice %38 {offsets = [0, 9], sizes = [9, 1], strides = [1, 1]} : vector<16x17xf32> to vector<9x1xf32>
    %cst_9 = arith.constant dense<0.000000e+00> : vector<9x16xf32>
    %41 = tpu.matmul %39, %37, %cst_9 {dimension_numbers = #tpu.dot_dimension_numbers<[1], [0], [0], [1], [0, 0, 1, 1], [], []>} : vector<9x9xf32>, vector<9x16xf32>, vector<9x16xf32> -> vector<9x16xf32>
    %42 = vector.broadcast %40 : vector<9x1xf32> to vector<9x16xf32>
    %43 = arith.addf %41, %42 : vector<9x16xf32>
    %44 = math.tanh %43 : vector<9x16xf32>
    %45 = vector.extract_strided_slice %0 {offsets = [96, 0], sizes = [16, 17], strides = [1, 1]} : vector<128x17xf32> to vector<16x17xf32>
    %46 = vector.extract_strided_slice %45 {offsets = [0, 0], sizes = [10, 9], strides = [1, 1]} : vector<16x17xf32> to vector<10x9xf32>
    %47 = vector.extract_strided_slice %45 {offsets = [0, 9], sizes = [10, 1], strides = [1, 1]} : vector<16x17xf32> to vector<10x1xf32>
    %cst_10 = arith.constant dense<0.000000e+00> : vector<10x16xf32>
    %48 = tpu.matmul %46, %44, %cst_10 {dimension_numbers = #tpu.dot_dimension_numbers<[1], [0], [0], [1], [0, 0, 1, 1], [], []>} : vector<10x9xf32>, vector<9x16xf32>, vector<10x16xf32> -> vector<10x16xf32>
    %49 = vector.broadcast %47 : vector<10x1xf32> to vector<10x16xf32>
    %50 = arith.addf %48, %49 : vector<10x16xf32>
    %51 = math.tanh %50 : vector<10x16xf32>
    %52 = vector.extract_strided_slice %0 {offsets = [112, 0], sizes = [16, 17], strides = [1, 1]} : vector<128x17xf32> to vector<16x17xf32>
    %53 = vector.extract_strided_slice %52 {offsets = [0, 0], sizes = [16, 10], strides = [1, 1]} : vector<16x17xf32> to vector<16x10xf32>
    %54 = vector.extract_strided_slice %52 {offsets = [0, 10], sizes = [16, 1], strides = [1, 1]} : vector<16x17xf32> to vector<16x1xf32>
    %cst_11 = arith.constant dense<0.000000e+00> : vector<16x16xf32>
    %55 = tpu.matmul %53, %51, %cst_11 {dimension_numbers = #tpu.dot_dimension_numbers<[1], [0], [0], [1], [0, 0, 1, 1], [], []>} : vector<16x10xf32>, vector<10x16xf32>, vector<16x16xf32> -> vector<16x16xf32>
    %56 = vector.broadcast %54 : vector<16x1xf32> to vector<16x16xf32>
    %57 = arith.addf %55, %56 : vector<16x16xf32>
    %c0_12 = arith.constant 0 : index
    %c0_13 = arith.constant 0 : index
    %58 = vector.load %arg4[%c0_12, %c0_13] : memref<16x16xf32, #tpu.memory_space<vmem>>, vector<16x16xf32>
    tpu.vector_store %arg4[%c0_12, %c0_13], %57 {strides = array<i32>} : memref<16x16xf32, #tpu.memory_space<vmem>>, vector<16x16xf32>,
    return
  }
  func.func @transform_0(%arg0: i32) -> (i32, i32) {
    %c0_i32 = arith.constant 0 : i32
    %c0_i32_0 = arith.constant 0 : i32
    return %c0_i32, %arg0 : i32, i32
  }
  func.func @transform_1(%arg0: i32) -> (i32, i32) {
    %c0_i32 = arith.constant 0 : i32
    %c0_i32_0 = arith.constant 0 : i32
    %c0_i32_1 = arith.constant 0 : i32
    return %c0_i32, %c0_i32_0 : i32, i32
  }
  func.func @transform_2(%arg0: i32) -> (i32, i32) {
    %c0_i32 = arith.constant 0 : i32
    %c0_i32_0 = arith.constant 0 : i32
    return %c0_i32, %arg0 : i32, i32
  }
  func.func @transform_3(%arg0: i32) -> (i32, i32) {
    %c0_i32 = arith.constant 0 : i32
    %c0_i32_0 = arith.constant 0 : i32
    return %c0_i32, %arg0 : i32, i32
  }
}

</mosaic_0001>

<llo_original>
// kernel: graph2vec_forward.1
$region0: #{graph2vec_forward.1}
  #allocation0 [shape = 'u32[]', space=smem, size = 0x4, offset = 0x4, fixed_abs, tag = 'smem constant byte address 0x4 - core index']
  #allocation1 [shape = 'u32[144,128]{1,0:T(1,128)}', space=vmem, size = 0x12000, scoped, tag = 'internal scratch']
  %s0 = inlined_call_operand.vmem [shape: f32[16,16], index: 0, kind: input, shape index: {}]
  %s1 = inlined_call_operand.vmem [shape: f32[128,17], index: 1, kind: input, shape index: {}]
  %s2 = inlined_call_operand.vmem [shape: f32[10,16], index: 2, kind: output, shape index: {0}]
  %s3 = inlined_call_operand.vmem [shape: f32[16,16], index: 3, kind: output, shape index: {1}]
  %4 = xla_tuple %s2, %s3
  %s5 = sld [smem:[#allocation0]]
  $region26: #{graph2vec_forward.1} parent=0
    _
  %s7 = ssub.s32 1, %s5
  %s8 = scalar_select 0, %s7, %s5
  // Predicated region
  $region2: #{graph2vec_forward.1} parent=0 // pred_check
    _
  $region3: #{graph2vec_forward.1} parent=0 // pred_check_branch
    %10 = sbr.rel (0) target = $region5
  $region4: #{graph2vec_forward.1} parent=0 // pred_region
    _
  $region5: #{graph2vec_forward.1} parent=0 // pred_fallthru
    _
  // Predicated region
  $region6: #{graph2vec_forward.1} parent=0 // pred_check
    _
  $region7: #{graph2vec_forward.1} parent=0 // pred_check_branch
    %12 = sbr.rel (0) target = $region9
  $region8: #{graph2vec_forward.1} parent=0 // pred_region
    _
  $region9: #{graph2vec_forward.1} parent=0 // pred_fallthru
    _
  %v13 = vld [vmem:[%s1] sm:$0xff]
  %v14 = vld [vmem:[%s1 + $0x8] sm:$0xff]
  %v15 = vld [vmem:[%s1 + $0x10] sm:$0xff]
  %v16 = vld [vmem:[%s1 + $0x18] sm:$0xff]
  %v17 = vld [vmem:[%s1 + $0x20] sm:$0xff]
  %v18 = vld [vmem:[%s1 + $0x28] sm:$0xff]
  %v19 = vld [vmem:[%s1 + $0x30] sm:$0xff]
  %v20 = vld [vmem:[%s1 + $0x38] sm:$0xff]
  %v21 = vld [vmem:[%s1 + $0x40] sm:$0xff]
  %v22 = vld [vmem:[%s1 + $0x48] sm:$0xff]
  %v23 = vld [vmem:[%s1 + $0x50] sm:$0xff]
  %v24 = vld [vmem:[%s1 + $0x58] sm:$0xff]
  %v25 = vld [vmem:[%s1 + $0x60] sm:$0xff]
  %v26 = vld [vmem:[%s1 + $0x68] sm:$0xff]
  %v27 = vld [vmem:[%s1 + $0x70] sm:$0xff]
  %v28 = vld [vmem:[%s1 + $0x78] sm:$0xff]
  %v29 = vld [vmem:[%s0] sm:$0xff]
  %v30 = vld [vmem:[%s0 + $0x8] sm:$0xff]
  %32 = vset.pattern.permute.xlu0 16
  %33 = vperm.xlu0 %32, %v13
  %v34 = vpop.permute.xlu0 %33
  %37 = vset.pattern.permute.xlu0 16
  %38 = vperm.xlu0 %37, %v14
  %v39 = vpop.permute.xlu0 %38
  %vm41 = vcmask 130048
  %v42 = vsel %vm41, %v13, 0
  %v44 = vsel %vm41, %v14, 0
  %46 = vmatprep.subr.mxu0 0.0
  %47 = vmatpush1.msra.mxu0 0.0
  %48 = vmatprep.subr.mxu0 0.0
  %49 = vmatpush1.msra.mxu0 0.0
  %50 = vmatprep.subr.mxu0 0.0
  %51 = vmatpush1.msra.mxu0 0.0
  %52 = vmatprep.subr.mxu0 0.0
  %53 = vmatpush1.msra.mxu0 0.0
  %54 = vmatprep.subr.mxu0 0.0
  %55 = vmatpush1.msra.mxu0 0.0
  %56 = vmatprep.subr.mxu0 0.0
  %57 = vmatpush1.msra.mxu0 0.0
  %58 = vmatprep.subr.mxu0 0.0
  %59 = vmatpush1.msra.mxu0 0.0
  %60 = vmatprep.subr.mxu0 0.0
  %61 = vmatpush1.msra.mxu0 0.0
  %62 = vmatprep.subr.mxu0 0.0
  %63 = vmatpush1.msra.mxu0 0.0
  %64 = vmatprep.subr.mxu0 0.0
  %65 = vmatpush1.msra.mxu0 0.0
  %66 = vmatprep.subr.mxu0 0.0
  %67 = vmatpush1.msra.mxu0 0.0
  %68 = vmatprep.subr.mxu0 0.0
  %69 = vmatpush1.msra.mxu0 0.0
  %70 = vmatprep.subr.mxu0 0.0
  %71 = vmatpush1.msra.mxu0 0.0
  %72 = vmatprep.subr.mxu0 0.0
  %73 = vmatpush1.msra.mxu0 0.0
  %74 = vmatprep.subr.mxu0 0.0
  %75 = vmatpush1.msra.mxu0 %v30
  %76 = vmatprep.subr.mxu0 0.0
  %77 = vmatpush1.msra.mxu0 %v29
  %78 = vmatprep.subr.mxu0 0.0
  %79 = vmatpush2.msra.mxu0 0.0
  %80 = vmatprep.subr.mxu0 0.0
  %81 = vmatpush2.msra.mxu0 0.0
  %82 = vmatprep.subr.mxu0 0.0
  %83 = vmatpush2.msra.mxu0 0.0
  %84 = vmatprep.subr.mxu0 0.0
  %85 = vmatpush2.msra.mxu0 0.0
  %86 = vmatprep.subr.mxu0 0.0
  %87 = vmatpush2.msra.mxu0 0.0
  %88 = vmatprep.subr.mxu0 0.0
  %89 = vmatpush2.msra.mxu0 0.0
  %90 = vmatprep.subr.mxu0 0.0
  %91 = vmatpush2.msra.mxu0 0.0
  %92 = vmatprep.subr.mxu0 0.0
  %93 = vmatpush2.msra.mxu0 0.0
  %94 = vmatprep.subr.mxu0 0.0
  %95 = vmatpush2.msra.mxu0 0.0
  %96 = vmatprep.subr.mxu0 0.0
  %97 = vmatpush2.msra.mxu0 0.0
  %98 = vmatprep.subr.mxu0 0.0
  %99 = vmatpush2.msra.mxu0 0.0
  %100 = vmatprep.subr.mxu0 0.0
  %101 = vmatpush2.msra.mxu0 0.0
  %102 = vmatprep.subr.mxu0 0.0
  %103 = vmatpush2.msra.mxu0 0.0
  %104 = vmatprep.subr.mxu0 0.0
  %105 = vmatpush2.msra.mxu0 0.0
  %106 = vmatprep.subr.mxu0 0.0
  %107 = vmatpush2.msra.mxu0 0.0
  %108 = vmatprep.subr.mxu0 0.0
  %109 = vmatpush2.msra.mxu0 0.0
  %110 = vmatprep.mubr.f32.mxu0 0.0
  %111 = vmatmul.mubr.f32.gmra.mxu0 %v42
  %v112 = vpop.f32.mrf.mxu0
  %v113 = vadd.f32 %v34, %v112
  %v114 = vpop.f32.mrf.mxu0
  %115 = vmatprep.mubr.f32.mxu0 0.0
  %116 = vmatmul.mubr.f32.gmra.mxu0 %v44
  %v117 = vpop.f32.mrf.mxu0
  %v118 = vadd.f32 %v39, %v117
  %v119 = vpop.f32.mrf.mxu0
  %120 = vdwg.mxu0
  %v121 = vtanh.pop %v113
  %v122 = vtanh.pop %v118
  %124 = vset.pattern.permute.xlu0 10
  %125 = vperm.xlu0 %124, %v15
  %v126 = vpop.permute.xlu0 %125
  %129 = vset.pattern.permute.xlu0 10
  %130 = vperm.xlu0 %129, %v16
  %v131 = vpop.permute.xlu0 %130
  %vm133 = vcmask 80896
  %v134 = vsel %vm133, %v15, 0
  %v136 = vsel %vm133, %v16, 0
  %vm138 = vcmask 1041408
  %v140 = vsel %vm138, %v122, 0
  %142 = vmatprep.subr.mxu0 0.0
  %143 = vmatpush1.msra.mxu0 0.0
  %144 = vmatprep.subr.mxu0 0.0
  %145 = vmatpush1.msra.mxu0 0.0
  %146 = vmatprep.subr.mxu0 0.0
  %147 = vmatpush1.msra.mxu0 0.0
  %148 = vmatprep.subr.mxu0 0.0
  %149 = vmatpush1.msra.mxu0 0.0
  %150 = vmatprep.subr.mxu0 0.0
  %151 = vmatpush1.msra.mxu0 0.0
  %152 = vmatprep.subr.mxu0 0.0
  %153 = vmatpush1.msra.mxu0 0.0
  %154 = vmatprep.subr.mxu0 0.0
  %155 = vmatpush1.msra.mxu0 0.0
  %156 = vmatprep.subr.mxu0 0.0
  %157 = vmatpush1.msra.mxu0 0.0
  %158 = vmatprep.subr.mxu0 0.0
  %159 = vmatpush1.msra.mxu0 0.0
  %160 = vmatprep.subr.mxu0 0.0
  %161 = vmatpush1.msra.mxu0 0.0
  %162 = vmatprep.subr.mxu0 0.0
  %163 = vmatpush1.msra.mxu0 0.0
  %164 = vmatprep.subr.mxu0 0.0
  %165 = vmatpush1.msra.mxu0 0.0
  %166 = vmatprep.subr.mxu0 0.0
  %167 = vmatpush1.msra.mxu0 0.0
  %168 = vmatprep.subr.mxu0 0.0
  %169 = vmatpush1.msra.mxu0 0.0
  %170 = vmatprep.subr.mxu0 0.0
  %171 = vmatpush1.msra.mxu0 %v140
  %172 = vmatprep.subr.mxu0 0.0
  %173 = vmatpush1.msra.mxu0 %v121
  %174 = vmatprep.subr.mxu0 0.0
  %175 = vmatpush2.msra.mxu0 0.0
  %176 = vmatprep.subr.mxu0 0.0
  %177 = vmatpush2.msra.mxu0 0.0
  %178 = vmatprep.subr.mxu0 0.0
  %179 = vmatpush2.msra.mxu0 0.0
  %180 = vmatprep.subr.mxu0 0.0
  %181 = vmatpush2.msra.mxu0 0.0
  %182 = vmatprep.subr.mxu0 0.0
  %183 = vmatpush2.msra.mxu0 0.0
  %184 = vmatprep.subr.mxu0 0.0
  %185 = vmatpush2.msra.mxu0 0.0
  %186 = vmatprep.subr.mxu0 0.0
  %187 = vmatpush2.msra.mxu0 0.0
  %188 = vmatprep.subr.mxu0 0.0
  %189 = vmatpush2.msra.mxu0 0.0
  %190 = vmatprep.subr.mxu0 0.0
  %191 = vmatpush2.msra.mxu0 0.0
  %192 = vmatprep.subr.mxu0 0.0
  %193 = vmatpush2.msra.mxu0 0.0
  %194 = vmatprep.subr.mxu0 0.0
  %195 = vmatpush2.msra.mxu0 0.0
  %196 = vmatprep.subr.mxu0 0.0
  %197 = vmatpush2.msra.mxu0 0.0
  %198 = vmatprep.subr.mxu0 0.0
  %199 = vmatpush2.msra.mxu0 0.0
  %200 = vmatprep.subr.mxu0 0.0
  %201 = vmatpush2.msra.mxu0 0.0
  %202 = vmatprep.subr.mxu0 0.0
  %203 = vmatpush2.msra.mxu0 0.0
  %204 = vmatprep.subr.mxu0 0.0
  %205 = vmatpush2.msra.mxu0 0.0
  %206 = vmatprep.mubr.f32.mxu0 0.0
  %207 = vmatmul.mubr.f32.gmra.mxu0 %v134
  %v208 = vpop.f32.mrf.mxu0
  %v209 = vadd.f32 %v126, %v208
  %v210 = vpop.f32.mrf.mxu0
  %211 = vmatprep.mubr.f32.mxu0 0.0
  %212 = vmatmul.mubr.f32.gmra.mxu0 %v136
  %v213 = vpop.f32.mrf.mxu0
  %v214 = vadd.f32 %v131, %v213
  %v215 = vpop.f32.mrf.mxu0
  %216 = vdwg.mxu0
  %v217 = vtanh.pop %v209
  %v218 = vtanh.pop %v214
  %220 = vset.pattern.permute.xlu0 9
  %221 = vperm.xlu0 %220, %v17
  %v222 = vpop.permute.xlu0 %221
  %225 = vset.pattern.permute.xlu0 9
  %226 = vperm.xlu0 %225, %v18
  %v227 = vpop.permute.xlu0 %226
  %vm229 = vcmask 72704
  %v230 = vsel %vm229, %v17, 0
  %v232 = vsel %vm229, %v18, 0
  %vm234 = vcmask 1040384
  %v236 = vsel %vm234, %v218, 0
  %238 = vmatprep.subr.mxu0 0.0
  %239 = vmatpush1.msra.mxu0 0.0
  %240 = vmatprep.subr.mxu0 0.0
  %241 = vmatpush1.msra.mxu0 0.0
  %242 = vmatprep.subr.mxu0 0.0
  %243 = vmatpush1.msra.mxu0 0.0
  %244 = vmatprep.subr.mxu0 0.0
  %245 = vmatpush1.msra.mxu0 0.0
  %246 = vmatprep.subr.mxu0 0.0
  %247 = vmatpush1.msra.mxu0 0.0
  %248 = vmatprep.subr.mxu0 0.0
  %249 = vmatpush1.msra.mxu0 0.0
  %250 = vmatprep.subr.mxu0 0.0
  %251 = vmatpush1.msra.mxu0 0.0
  %252 = vmatprep.subr.mxu0 0.0
  %253 = vmatpush1.msra.mxu0 0.0
  %254 = vmatprep.subr.mxu0 0.0
  %255 = vmatpush1.msra.mxu0 0.0
  %256 = vmatprep.subr.mxu0 0.0
  %257 = vmatpush1.msra.mxu0 0.0
  %258 = vmatprep.subr.mxu0 0.0
  %259 = vmatpush1.msra.mxu0 0.0
  %260 = vmatprep.subr.mxu0 0.0
  %261 = vmatpush1.msra.mxu0 0.0
  %262 = vmatprep.subr.mxu0 0.0
  %263 = vmatpush1.msra.mxu0 0.0
  %264 = vmatprep.subr.mxu0 0.0
  %265 = vmatpush1.msra.mxu0 0.0
  %266 = vmatprep.subr.mxu0 0.0
  %267 = vmatpush1.msra.mxu0 %v236
  %268 = vmatprep.subr.mxu0 0.0
  %269 = vmatpush1.msra.mxu0 %v217
  %270 = vmatprep.subr.mxu0 0.0
  %271 = vmatpush2.msra.mxu0 0.0
  %272 = vmatprep.subr.mxu0 0.0
  %273 = vmatpush2.msra.mxu0 0.0
  %274 = vmatprep.subr.mxu0 0.0
  %275 = vmatpush2.msra.mxu0 0.0
  %276 = vmatprep.subr.mxu0 0.0
  %277 = vmatpush2.msra.mxu0 0.0
  %278 = vmatprep.subr.mxu0 0.0
  %279 = vmatpush2.msra.mxu0 0.0
  %280 = vmatprep.subr.mxu0 0.0
  %281 = vmatpush2.msra.mxu0 0.0
  %282 = vmatprep.subr.mxu0 0.0
  %283 = vmatpush2.msra.mxu0 0.0
  %284 = vmatprep.subr.mxu0 0.0
  %285 = vmatpush2.msra.mxu0 0.0
  %286 = vmatprep.subr.mxu0 0.0
  %287 = vmatpush2.msra.mxu0 0.0
  %288 = vmatprep.subr.mxu0 0.0
  %289 = vmatpush2.msra.mxu0 0.0
  %290 = vmatprep.subr.mxu0 0.0
  %291 = vmatpush2.msra.mxu0 0.0
  %292 = vmatprep.subr.mxu0 0.0
  %293 = vmatpush2.msra.mxu0 0.0
  %294 = vmatprep.subr.mxu0 0.0
  %295 = vmatpush2.msra.mxu0 0.0
  %296 = vmatprep.subr.mxu0 0.0
  %297 = vmatpush2.msra.mxu0 0.0
  %298 = vmatprep.subr.mxu0 0.0
  %299 = vmatpush2.msra.mxu0 0.0
  %300 = vmatprep.subr.mxu0 0.0
  %301 = vmatpush2.msra.mxu0 0.0
  %302 = vmatprep.mubr.f32.mxu0 0.0
  %303 = vmatmul.mubr.f32.gmra.mxu0 %v230
  %v304 = vpop.f32.mrf.mxu0
  %v305 = vadd.f32 %v222, %v304
  %v306 = vpop.f32.mrf.mxu0
  %307 = vmatprep.mubr.f32.mxu0 0.0
  %308 = vmatmul.mubr.f32.gmra.mxu0 %v232
  %v309 = vpop.f32.mrf.mxu0
  %v310 = vadd.f32 %v227, %v309
  %v311 = vpop.f32.mrf.mxu0
  %312 = vdwg.mxu0
  %v313 = vtanh.pop %v305
  %v314 = vtanh.pop %v310
  %316 = vset.pattern.permute.xlu0 9
  %317 = vperm.xlu0 %316, %v19
  %v318 = vpop.permute.xlu0 %317
  %321 = vset.pattern.permute.xlu0 9
  %322 = vperm.xlu0 %321, %v20
  %v323 = vpop.permute.xlu0 %322
  %v325 = vsel %vm229, %v19, 0
  %v327 = vsel %vm229, %v20, 0
  %v330 = vsel %vm234, %v314, 0
  %332 = vmatprep.subr.mxu0 0.0
  %333 = vmatpush1.msra.mxu0 0.0
  %334 = vmatprep.subr.mxu0 0.0
  %335 = vmatpush1.msra.mxu0 0.0
  %336 = vmatprep.subr.mxu0 0.0
  %337 = vmatpush1.msra.mxu0 0.0
  %338 = vmatprep.subr.mxu0 0.0
  %339 = vmatpush1.msra.mxu0 0.0
  %340 = vmatprep.subr.mxu0 0.0
  %341 = vmatpush1.msra.mxu0 0.0
  %342 = vmatprep.subr.mxu0 0.0
  %343 = vmatpush1.msra.mxu0 0.0
  %344 = vmatprep.subr.mxu0 0.0
  %345 = vmatpush1.msra.mxu0 0.0
  %346 = vmatprep.subr.mxu0 0.0
  %347 = vmatpush1.msra.mxu0 0.0
  %348 = vmatprep.subr.mxu0 0.0
  %349 = vmatpush1.msra.mxu0 0.0
  %350 = vmatprep.subr.mxu0 0.0
  %351 = vmatpush1.msra.mxu0 0.0
  %352 = vmatprep.subr.mxu0 0.0
  %353 = vmatpush1.msra.mxu0 0.0
  %354 = vmatprep.subr.mxu0 0.0
  %355 = vmatpush1.msra.mxu0 0.0
  %356 = vmatprep.subr.mxu0 0.0
  %357 = vmatpush1.msra.mxu0 0.0
  %358 = vmatprep.subr.mxu0 0.0
  %359 = vmatpush1.msra.mxu0 0.0
  %360 = vmatprep.subr.mxu0 0.0
  %361 = vmatpush1.msra.mxu0 %v330
  %362 = vmatprep.subr.mxu0 0.0
  %363 = vmatpush1.msra.mxu0 %v313
  %364 = vmatprep.subr.mxu0 0.0
  %365 = vmatpush2.msra.mxu0 0.0
  %366 = vmatprep.subr.mxu0 0.0
  %367 = vmatpush2.msra.mxu0 0.0
  %368 = vmatprep.subr.mxu0 0.0
  %369 = vmatpush2.msra.mxu0 0.0
  %370 = vmatprep.subr.mxu0 0.0
  %371 = vmatpush2.msra.mxu0 0.0
  %372 = vmatprep.subr.mxu0 0.0
  %373 = vmatpush2.msra.mxu0 0.0
  %374 = vmatprep.subr.mxu0 0.0
  %375 = vmatpush2.msra.mxu0 0.0
  %376 = vmatprep.subr.mxu0 0.0
  %377 = vmatpush2.msra.mxu0 0.0
  %378 = vmatprep.subr.mxu0 0.0
  %379 = vmatpush2.msra.mxu0 0.0
  %380 = vmatprep.subr.mxu0 0.0
  %381 = vmatpush2.msra.mxu0 0.0
  %382 = vmatprep.subr.mxu0 0.0
  %383 = vmatpush2.msra.mxu0 0.0
  %384 = vmatprep.subr.mxu0 0.0
  %385 = vmatpush2.msra.mxu0 0.0
  %386 = vmatprep.subr.mxu0 0.0
  %387 = vmatpush2.msra.mxu0 0.0
  %388 = vmatprep.subr.mxu0 0.0
  %389 = vmatpush2.msra.mxu0 0.0
  %390 = vmatprep.subr.mxu0 0.0
  %391 = vmatpush2.msra.mxu0 0.0
  %392 = vmatprep.subr.mxu0 0.0
  %393 = vmatpush2.msra.mxu0 0.0
  %394 = vmatprep.subr.mxu0 0.0
  %395 = vmatpush2.msra.mxu0 0.0
  %396 = vmatprep.mubr.f32.mxu0 0.0
  %397 = vmatmul.mubr.f32.gmra.mxu0 %v325
  %v398 = vpop.f32.mrf.mxu0
  %v399 = vadd.f32 %v318, %v398
  %v400 = vpop.f32.mrf.mxu0
  %401 = vmatprep.mubr.f32.mxu0 0.0
  %402 = vmatmul.mubr.f32.gmra.mxu0 %v327
  %v403 = vpop.f32.mrf.mxu0
  %v404 = vadd.f32 %v323, %v403
  %v405 = vpop.f32.mrf.mxu0
  %406 = vdwg.mxu0
  %v407 = vtanh.pop %v399
  %v408 = vtanh.pop %v404
  %409 = vst.msk [vmem:[%s2] sm:$0xff] %vm41, %v407
  %vm410 = vcmask 123904
  %411 = vst.msk [vmem:[%s2 + $0x8] sm:$0x3] %vm410, %v408
  %413 = vset.pattern.permute.xlu0 10
  %414 = vperm.xlu0 %413, %v21
  %v415 = vpop.permute.xlu0 %414
  %418 = vset.pattern.permute.xlu0 10
  %419 = vperm.xlu0 %418, %v22
  %v420 = vpop.permute.xlu0 %419
  %v422 = vsel %vm133, %v21, 0
  %v424 = vsel %vm133, %v22, 0
  %v427 = vsel %vm138, %v408, 0
  %429 = vmatprep.subr.mxu0 0.0
  %430 = vmatpush1.msra.mxu0 0.0
  %431 = vmatprep.subr.mxu0 0.0
  %432 = vmatpush1.msra.mxu0 0.0
  %433 = vmatprep.subr.mxu0 0.0
  %434 = vmatpush1.msra.mxu0 0.0
  %435 = vmatprep.subr.mxu0 0.0
  %436 = vmatpush1.msra.mxu0 0.0
  %437 = vmatprep.subr.mxu0 0.0
  %438 = vmatpush1.msra.mxu0 0.0
  %439 = vmatprep.subr.mxu0 0.0
  %440 = vmatpush1.msra.mxu0 0.0
  %441 = vmatprep.subr.mxu0 0.0
  %442 = vmatpush1.msra.mxu0 0.0
  %443 = vmatprep.subr.mxu0 0.0
  %444 = vmatpush1.msra.mxu0 0.0
  %445 = vmatprep.subr.mxu0 0.0
  %446 = vmatpush1.msra.mxu0 0.0
  %447 = vmatprep.subr.mxu0 0.0
  %448 = vmatpush1.msra.mxu0 0.0
  %449 = vmatprep.subr.mxu0 0.0
  %450 = vmatpush1.msra.mxu0 0.0
  %451 = vmatprep.subr.mxu0 0.0
  %452 = vmatpush1.msra.mxu0 0.0
  %453 = vmatprep.subr.mxu0 0.0
  %454 = vmatpush1.msra.mxu0 0.0
  %455 = vmatprep.subr.mxu0 0.0
  %456 = vmatpush1.msra.mxu0 0.0
  %457 = vmatprep.subr.mxu0 0.0
  %458 = vmatpush1.msra.mxu0 %v427
  %459 = vmatprep.subr.mxu0 0.0
  %460 = vmatpush1.msra.mxu0 %v407
  %461 = vmatprep.subr.mxu0 0.0
  %462 = vmatpush2.msra.mxu0 0.0
  %463 = vmatprep.subr.mxu0 0.0
  %464 = vmatpush2.msra.mxu0 0.0
  %465 = vmatprep.subr.mxu0 0.0
  %466 = vmatpush2.msra.mxu0 0.0
  %467 = vmatprep.subr.mxu0 0.0
  %468 = vmatpush2.msra.mxu0 0.0
  %469 = vmatprep.subr.mxu0 0.0
  %470 = vmatpush2.msra.mxu0 0.0
  %471 = vmatprep.subr.mxu0 0.0
  %472 = vmatpush2.msra.mxu0 0.0
  %473 = vmatprep.subr.mxu0 0.0
  %474 = vmatpush2.msra.mxu0 0.0
  %475 = vmatprep.subr.mxu0 0.0
  %476 = vmatpush2.msra.mxu0 0.0
  %477 = vmatprep.subr.mxu0 0.0
  %478 = vmatpush2.msra.mxu0 0.0
  %479 = vmatprep.subr.mxu0 0.0
  %480 = vmatpush2.msra.mxu0 0.0
  %481 = vmatprep.subr.mxu0 0.0
  %482 = vmatpush2.msra.mxu0 0.0
  %483 = vmatprep.subr.mxu0 0.0
  %484 = vmatpush2.msra.mxu0 0.0
  %485 = vmatprep.subr.mxu0 0.0
  %486 = vmatpush2.msra.mxu0 0.0
  %487 = vmatprep.subr.mxu0 0.0
  %488 = vmatpush2.msra.mxu0 0.0
  %489 = vmatprep.subr.mxu0 0.0
  %490 = vmatpush2.msra.mxu0 0.0
  %491 = vmatprep.subr.mxu0 0.0
  %492 = vmatpush2.msra.mxu0 0.0
  %493 = vmatprep.mubr.f32.mxu0 0.0
  %494 = vmatmul.mubr.f32.gmra.mxu0 %v422
  %v495 = vpop.f32.mrf.mxu0
  %v496 = vadd.f32 %v415, %v495
  %v497 = vpop.f32.mrf.mxu0
  %498 = vmatprep.mubr.f32.mxu0 0.0
  %499 = vmatmul.mubr.f32.gmra.mxu0 %v424
  %v500 = vpop.f32.mrf.mxu0
  %v501 = vadd.f32 %v420, %v500
  %v502 = vpop.f32.mrf.mxu0
  %503 = vdwg.mxu0
  %v504 = vtanh.pop %v496
  %v505 = vtanh.pop %v501
  %507 = vset.pattern.permute.xlu0 9
  %508 = vperm.xlu0 %507, %v23
  %v509 = vpop.permute.xlu0 %508
  %512 = vset.pattern.permute.xlu0 9
  %513 = vperm.xlu0 %512, %v24
  %v514 = vpop.permute.xlu0 %513
  %v516 = vsel %vm229, %v23, 0
  %v518 = vsel %vm229, %v24, 0
  %v521 = vsel %vm234, %v505, 0
  %523 = vmatprep.subr.mxu0 0.0
  %524 = vmatpush1.msra.mxu0 0.0
  %525 = vmatprep.subr.mxu0 0.0
  %526 = vmatpush1.msra.mxu0 0.0
  %527 = vmatprep.subr.mxu0 0.0
  %528 = vmatpush1.msra.mxu0 0.0
  %529 = vmatprep.subr.mxu0 0.0
  %530 = vmatpush1.msra.mxu0 0.0
  %531 = vmatprep.subr.mxu0 0.0
  %532 = vmatpush1.msra.mxu0 0.0
  %533 = vmatprep.subr.mxu0 0.0
  %534 = vmatpush1.msra.mxu0 0.0
  %535 = vmatprep.subr.mxu0 0.0
  %536 = vmatpush1.msra.mxu0 0.0
  %537 = vmatprep.subr.mxu0 0.0
  %538 = vmatpush1.msra.mxu0 0.0
  %539 = vmatprep.subr.mxu0 0.0
  %540 = vmatpush1.msra.mxu0 0.0
  %541 = vmatprep.subr.mxu0 0.0
  %542 = vmatpush1.msra.mxu0 0.0
  %543 = vmatprep.subr.mxu0 0.0
  %544 = vmatpush1.msra.mxu0 0.0
  %545 = vmatprep.subr.mxu0 0.0
  %546 = vmatpush1.msra.mxu0 0.0
  %547 = vmatprep.subr.mxu0 0.0
  %548 = vmatpush1.msra.mxu0 0.0
  %549 = vmatprep.subr.mxu0 0.0
  %550 = vmatpush1.msra.mxu0 0.0
  %551 = vmatprep.subr.mxu0 0.0
  %552 = vmatpush1.msra.mxu0 %v521
  %553 = vmatprep.subr.mxu0 0.0
  %554 = vmatpush1.msra.mxu0 %v504
  %555 = vmatprep.subr.mxu0 0.0
  %556 = vmatpush2.msra.mxu0 0.0
  %557 = vmatprep.subr.mxu0 0.0
  %558 = vmatpush2.msra.mxu0 0.0
  %559 = vmatprep.subr.mxu0 0.0
  %560 = vmatpush2.msra.mxu0 0.0
  %561 = vmatprep.subr.mxu0 0.0
  %562 = vmatpush2.msra.mxu0 0.0
  %563 = vmatprep.subr.mxu0 0.0
  %564 = vmatpush2.msra.mxu0 0.0
  %565 = vmatprep.subr.mxu0 0.0
  %566 = vmatpush2.msra.mxu0 0.0
  %567 = vmatprep.subr.mxu0 0.0
  %568 = vmatpush2.msra.mxu0 0.0
  %569 = vmatprep.subr.mxu0 0.0
  %570 = vmatpush2.msra.mxu0 0.0
  %571 = vmatprep.subr.mxu0 0.0
  %572 = vmatpush2.msra.mxu0 0.0
  %573 = vmatprep.subr.mxu0 0.0
  %574 = vmatpush2.msra.mxu0 0.0
  %575 = vmatprep.subr.mxu0 0.0
  %576 = vmatpush2.msra.mxu0 0.0
  %577 = vmatprep.subr.mxu0 0.0
  %578 = vmatpush2.msra.mxu0 0.0
  %579 = vmatprep.subr.mxu0 0.0
  %580 = vmatpush2.msra.mxu0 0.0
  %581 = vmatprep.subr.mxu0 0.0
  %582 = vmatpush2.msra.mxu0 0.0
  %583 = vmatprep.subr.mxu0 0.0
  %584 = vmatpush2.msra.mxu0 0.0
  %585 = vmatprep.subr.mxu0 0.0
  %586 = vmatpush2.msra.mxu0 0.0
  %587 = vmatprep.mubr.f32.mxu0 0.0
  %588 = vmatmul.mubr.f32.gmra.mxu0 %v516
  %v589 = vpop.f32.mrf.mxu0
  %v590 = vadd.f32 %v509, %v589
  %v591 = vpop.f32.mrf.mxu0
  %592 = vmatprep.mubr.f32.mxu0 0.0
  %593 = vmatmul.mubr.f32.gmra.mxu0 %v518
  %v594 = vpop.f32.mrf.mxu0
  %v595 = vadd.f32 %v514, %v594
  %v596 = vpop.f32.mrf.mxu0
  %597 = vdwg.mxu0
  %v598 = vtanh.pop %v590
  %v599 = vtanh.pop %v595
  %601 = vset.pattern.permute.xlu0 9
  %602 = vperm.xlu0 %601, %v25
  %v603 = vpop.permute.xlu0 %602
  %606 = vset.pattern.permute.xlu0 9
  %607 = vperm.xlu0 %606, %v26
  %v608 = vpop.permute.xlu0 %607
  %v610 = vsel %vm229, %v25, 0
  %v612 = vsel %vm229, %v26, 0
  %v615 = vsel %vm234, %v599, 0
  %617 = vmatprep.subr.mxu0 0.0
  %618 = vmatpush1.msra.mxu0 0.0
  %619 = vmatprep.subr.mxu0 0.0
  %620 = vmatpush1.msra.mxu0 0.0
  %621 = vmatprep.subr.mxu0 0.0
  %622 = vmatpush1.msra.mxu0 0.0
  %623 = vmatprep.subr.mxu0 0.0
  %624 = vmatpush1.msra.mxu0 0.0
  %625 = vmatprep.subr.mxu0 0.0
  %626 = vmatpush1.msra.mxu0 0.0
  %627 = vmatprep.subr.mxu0 0.0
  %628 = vmatpush1.msra.mxu0 0.0
  %629 = vmatprep.subr.mxu0 0.0
  %630 = vmatpush1.msra.mxu0 0.0
  %631 = vmatprep.subr.mxu0 0.0
  %632 = vmatpush1.msra.mxu0 0.0
  %633 = vmatprep.subr.mxu0 0.0
  %634 = vmatpush1.msra.mxu0 0.0
  %635 = vmatprep.subr.mxu0 0.0
  %636 = vmatpush1.msra.mxu0 0.0
  %637 = vmatprep.subr.mxu0 0.0
  %638 = vmatpush1.msra.mxu0 0.0
  %639 = vmatprep.subr.mxu0 0.0
  %640 = vmatpush1.msra.mxu0 0.0
  %641 = vmatprep.subr.mxu0 0.0
  %642 = vmatpush1.msra.mxu0 0.0
  %643 = vmatprep.subr.mxu0 0.0
  %644 = vmatpush1.msra.mxu0 0.0
  %645 = vmatprep.subr.mxu0 0.0
  %646 = vmatpush1.msra.mxu0 %v615
  %647 = vmatprep.subr.mxu0 0.0
  %648 = vmatpush1.msra.mxu0 %v598
  %649 = vmatprep.subr.mxu0 0.0
  %650 = vmatpush2.msra.mxu0 0.0
  %651 = vmatprep.subr.mxu0 0.0
  %652 = vmatpush2.msra.mxu0 0.0
  %653 = vmatprep.subr.mxu0 0.0
  %654 = vmatpush2.msra.mxu0 0.0
  %655 = vmatprep.subr.mxu0 0.0
  %656 = vmatpush2.msra.mxu0 0.0
  %657 = vmatprep.subr.mxu0 0.0
  %658 = vmatpush2.msra.mxu0 0.0
  %659 = vmatprep.subr.mxu0 0.0
  %660 = vmatpush2.msra.mxu0 0.0
  %661 = vmatprep.subr.mxu0 0.0
  %662 = vmatpush2.msra.mxu0 0.0
  %663 = vmatprep.subr.mxu0 0.0
  %664 = vmatpush2.msra.mxu0 0.0
  %665 = vmatprep.subr.mxu0 0.0
  %666 = vmatpush2.msra.mxu0 0.0
  %667 = vmatprep.subr.mxu0 0.0
  %668 = vmatpush2.msra.mxu0 0.0
  %669 = vmatprep.subr.mxu0 0.0
  %670 = vmatpush2.msra.mxu0 0.0
  %671 = vmatprep.subr.mxu0 0.0
  %672 = vmatpush2.msra.mxu0 0.0
  %673 = vmatprep.subr.mxu0 0.0
  %674 = vmatpush2.msra.mxu0 0.0
  %675 = vmatprep.subr.mxu0 0.0
  %676 = vmatpush2.msra.mxu0 0.0
  %677 = vmatprep.subr.mxu0 0.0
  %678 = vmatpush2.msra.mxu0 0.0
  %679 = vmatprep.subr.mxu0 0.0
  %680 = vmatpush2.msra.mxu0 0.0
  %681 = vmatprep.mubr.f32.mxu0 0.0
  %682 = vmatmul.mubr.f32.gmra.mxu0 %v610
  %v683 = vpop.f32.mrf.mxu0
  %v684 = vadd.f32 %v603, %v683
  %v685 = vpop.f32.mrf.mxu0
  %686 = vmatprep.mubr.f32.mxu0 0.0
  %687 = vmatmul.mubr.f32.gmra.mxu0 %v612
  %v688 = vpop.f32.mrf.mxu0
  %v689 = vadd.f32 %v608, %v688
  %v690 = vpop.f32.mrf.mxu0
  %691 = vdwg.mxu0
  %v692 = vtanh.pop %v684
  %v693 = vtanh.pop %v689
  %695 = vset.pattern.permute.xlu0 10
  %696 = vperm.xlu0 %695, %v27
  %v697 = vpop.permute.xlu0 %696
  %700 = vset.pattern.permute.xlu0 10
  %701 = vperm.xlu0 %700, %v28
  %v702 = vpop.permute.xlu0 %701
  %v704 = vsel %vm133, %v27, 0
  %v706 = vsel %vm133, %v28, 0
  %v709 = vsel %vm138, %v693, 0
  %711 = vmatprep.subr.mxu0 0.0
  %712 = vmatpush1.msra.mxu0 0.0
  %713 = vmatprep.subr.mxu0 0.0
  %714 = vmatpush1.msra.mxu0 0.0
  %715 = vmatprep.subr.mxu0 0.0
  %716 = vmatpush1.msra.mxu0 0.0
  %717 = vmatprep.subr.mxu0 0.0
  %718 = vmatpush1.msra.mxu0 0.0
  %719 = vmatprep.subr.mxu0 0.0
  %720 = vmatpush1.msra.mxu0 0.0
  %721 = vmatprep.subr.mxu0 0.0
  %722 = vmatpush1.msra.mxu0 0.0
  %723 = vmatprep.subr.mxu0 0.0
  %724 = vmatpush1.msra.mxu0 0.0
  %725 = vmatprep.subr.mxu0 0.0
  %726 = vmatpush1.msra.mxu0 0.0
  %727 = vmatprep.subr.mxu0 0.0
  %728 = vmatpush1.msra.mxu0 0.0
  %729 = vmatprep.subr.mxu0 0.0
  %730 = vmatpush1.msra.mxu0 0.0
  %731 = vmatprep.subr.mxu0 0.0
  %732 = vmatpush1.msra.mxu0 0.0
  %733 = vmatprep.subr.mxu0 0.0
  %734 = vmatpush1.msra.mxu0 0.0
  %735 = vmatprep.subr.mxu0 0.0
  %736 = vmatpush1.msra.mxu0 0.0
  %737 = vmatprep.subr.mxu0 0.0
  %738 = vmatpush1.msra.mxu0 0.0
  %739 = vmatprep.subr.mxu0 0.0
  %740 = vmatpush1.msra.mxu0 %v709
  %741 = vmatprep.subr.mxu0 0.0
  %742 = vmatpush1.msra.mxu0 %v692
  %743 = vmatprep.subr.mxu0 0.0
  %744 = vmatpush2.msra.mxu0 0.0
  %745 = vmatprep.subr.mxu0 0.0
  %746 = vmatpush2.msra.mxu0 0.0
  %747 = vmatprep.subr.mxu0 0.0
  %748 = vmatpush2.msra.mxu0 0.0
  %749 = vmatprep.subr.mxu0 0.0
  %750 = vmatpush2.msra.mxu0 0.0
  %751 = vmatprep.subr.mxu0 0.0
  %752 = vmatpush2.msra.mxu0 0.0
  %753 = vmatprep.subr.mxu0 0.0
  %754 = vmatpush2.msra.mxu0 0.0
  %755 = vmatprep.subr.mxu0 0.0
  %756 = vmatpush2.msra.mxu0 0.0
  %757 = vmatprep.subr.mxu0 0.0
  %758 = vmatpush2.msra.mxu0 0.0
  %759 = vmatprep.subr.mxu0 0.0
  %760 = vmatpush2.msra.mxu0 0.0
  %761 = vmatprep.subr.mxu0 0.0
  %762 = vmatpush2.msra.mxu0 0.0
  %763 = vmatprep.subr.mxu0 0.0
  %764 = vmatpush2.msra.mxu0 0.0
  %765 = vmatprep.subr.mxu0 0.0
  %766 = vmatpush2.msra.mxu0 0.0
  %767 = vmatprep.subr.mxu0 0.0
  %768 = vmatpush2.msra.mxu0 0.0
  %769 = vmatprep.subr.mxu0 0.0
  %770 = vmatpush2.msra.mxu0 0.0
  %771 = vmatprep.subr.mxu0 0.0
  %772 = vmatpush2.msra.mxu0 0.0
  %773 = vmatprep.subr.mxu0 0.0
  %774 = vmatpush2.msra.mxu0 0.0
  %775 = vmatprep.mubr.f32.mxu0 0.0
  %776 = vmatmul.mubr.f32.gmra.mxu0 %v704
  %v777 = vpop.f32.mrf.mxu0
  %v778 = vadd.f32 %v697, %v777
  %v779 = vpop.f32.mrf.mxu0
  %780 = vmatprep.mubr.f32.mxu0 0.0
  %781 = vmatmul.mubr.f32.gmra.mxu0 %v706
  %v782 = vpop.f32.mrf.mxu0
  %v783 = vadd.f32 %v702, %v782
  %v784 = vpop.f32.mrf.mxu0
  %785 = vdwg.mxu0
  %786 = vst.msk [vmem:[%s3] sm:$0xff] %vm41, %v778
  %787 = vst.msk [vmem:[%s3 + $0x8] sm:$0xff] %vm41, %v783
  // Predicated region
  $region10: #{graph2vec_forward.1} parent=0 // pred_check
    _
  $region11: #{graph2vec_forward.1} parent=0 // pred_check_branch
    %789 = sbr.rel (0) target = $region13
  $region12: #{graph2vec_forward.1} parent=0 // pred_region
    _
  $region13: #{graph2vec_forward.1} parent=0 // pred_fallthru
    _
  // Predicated region
  $region14: #{graph2vec_forward.1} parent=0 // pred_check
    _
  $region15: #{graph2vec_forward.1} parent=0 // pred_check_branch
    %791 = sbr.rel (0) target = $region17
  $region16: #{graph2vec_forward.1} parent=0 // pred_region
    _
  $region17: #{graph2vec_forward.1} parent=0 // pred_fallthru
    _
  // Predicated region
  $region18: #{graph2vec_forward.1} parent=0 // pred_check
    _
  $region19: #{graph2vec_forward.1} parent=0 // pred_check_branch
    %793 = sbr.rel (0) target = $region21
  $region20: #{graph2vec_forward.1} parent=0 // pred_region
    _
  $region21: #{graph2vec_forward.1} parent=0 // pred_fallthru
    _
  // Predicated region
  $region22: #{graph2vec_forward.1} parent=0 // pred_check
    _
  $region23: #{graph2vec_forward.1} parent=0 // pred_check_branch
    %795 = sbr.rel (0) target = $region25
  $region24: #{graph2vec_forward.1} parent=0 // pred_region
    _
  $region25: #{graph2vec_forward.1} parent=0 // pred_fallthru
    _

</llo_original>
